<compile_context>
chip_gen: v6e
topology: v6e:2x2x1
jax: 0.10.0
libtpu: 0.0.40
codegen_flags: <defaults>
</compile_context>

<pallas_src>
import functools

import jax
import jax.numpy as jnp
from jax.experimental import pallas as pl
from jax.experimental.pallas import tpu as pltpu


def _gnn_stack_kernel(x_ref, a_ref, w_ref, b_ref, o_ref, x_scr, xw_scr,
                      *, tm, skipsum, l2norm, eps):
    """Fused GNN stack. grid = (num_layers, num_row_tiles); layers outermost."""
    l = pl.program_id(0)
    m = pl.program_id(1)
    last_layer = pl.num_programs(0) - 1

    # Layer-0 init: bring the input features into the f32 residual carrier.
    @pl.when((l == 0) & (m == 0))
    def _():
        x_scr[...] = x_ref[...].astype(jnp.float32)

    # Once per layer: XW for ALL rows into bf16 scratch (bf16 MXU, f32 acc).
    @pl.when(m == 0)
    def _():
        xw = jnp.dot(x_scr[...].astype(jnp.bfloat16), w_ref[0],
                     preferred_element_type=jnp.float32)
        xw_scr[...] = xw.astype(jnp.bfloat16)

    # Row-tiled neighborhood aggregation on the MXU: A[tile, :] @ XW.
    row = pl.multiple_of(m * tm, tm)
    a_tile = a_ref[pl.ds(row, tm), :]
    agg = jnp.dot(a_tile, xw_scr[...], preferred_element_type=jnp.float32)

    # Epilogue in f32: bias + ReLU (+ skipsum residual). Update carrier in place
    # (safe: XW for this layer is already materialized in xw_scr).
    h = jnp.maximum(agg + b_ref[0], 0.0)
    if skipsum:
        h = x_scr[pl.ds(row, tm), :] + h
    x_scr[pl.ds(row, tm), :] = h

    # Final layer: optional row-wise L2 normalize (rsqrt -> EUP), write output.
    @pl.when(l == last_layer)
    def _():
        out = h
        if l2norm:
            ssq = jnp.sum(out * out, axis=-1, keepdims=True)
            out = out * jax.lax.rsqrt(jnp.maximum(ssq, eps * eps))
        o_ref[pl.ds(row, tm), :] = out.astype(o_ref.dtype)


def _round_up(v, m):
    return (v + m - 1) // m * m


def gnn_stack_stage(x, a_hat, params, *, stage_type="skipsum", l2norm=True,
                    tile_m=128):
    """Forward of GNNStackStage as one fused, tiled Pallas kernel."""
    assert stage_type in ("stack", "skipsum")  # TODO(synk): 'skipconcat' not modeled
    n, d_in = x.shape
    num_layers = len(params)
    d_out = params[0][0].shape[1]
    if stage_type == "skipsum":
        assert d_in == d_out, "skipsum requires dim_in == dim_out"

    d_pad = _round_up(max(d_in, d_out), 128)          # lane-dense features
    n_pad = _round_up(n, max(tile_m, 128))            # whole row tiles

    # Zero-pad to lane-dense shapes; padded A rows/cols are zero so padded nodes
    # never contaminate real rows, and padded feature columns stay exactly zero
    # through every layer (W/b pads are zero).
    xp = jnp.zeros((n_pad, d_pad), jnp.bfloat16).at[:n, :d_in].set(
        x.astype(jnp.bfloat16))
    ap = jnp.zeros((n_pad, n_pad), jnp.bfloat16).at[:n, :n].set(
        a_hat.astype(jnp.bfloat16))
    wp = jnp.zeros((num_layers, d_pad, d_pad), jnp.bfloat16)
    bp = jnp.zeros((num_layers, 1, d_pad), jnp.float32)
    for i, (w, b) in enumerate(params):
        wp = wp.at[i, :w.shape[0], :w.shape[1]].set(w.astype(jnp.bfloat16))
        bp = bp.at[i, :, :b.shape[1]].set(b.astype(jnp.float32))

    grid = (num_layers, n_pad // tile_m)
    kernel = functools.partial(
        _gnn_stack_kernel, tm=tile_m,
        skipsum=(stage_type == "skipsum"), l2norm=l2norm, eps=1e-12)

    flops = 2 * num_layers * (n_pad * d_pad * d_pad + n_pad * n_pad * d_pad)
    bytes_accessed = (xp.size * 2 + ap.size * 2 + wp.size * 2 + bp.size * 4
                      + n_pad * d_pad * 4)

    out = pl.pallas_call(
        kernel,
        out_shape=jax.ShapeDtypeStruct((n_pad, d_pad), jnp.float32),
        grid_spec=pltpu.PrefetchScalarGridSpec(
            num_scalar_prefetch=0,
            grid=grid,
            in_specs=[
                # x: constant block index -> DMA'd once, read only at (l=0,m=0).
                pl.BlockSpec((n_pad, d_pad), lambda l, m: (0, 0)),
                # A_hat: constant block index -> resident in VMEM for all layers.
                pl.BlockSpec((n_pad, n_pad), lambda l, m: (0, 0)),
                # Per-layer weights/bias: streamed (double-buffered) over l.
                pl.BlockSpec((1, d_pad, d_pad), lambda l, m: (l, 0, 0)),
                pl.BlockSpec((1, 1, d_pad), lambda l, m: (l, 0, 0)),
            ],
            # Output resident across the whole grid; single HBM writeback at end.
            out_specs=pl.BlockSpec((n_pad, d_pad), lambda l, m: (0, 0)),
            scratch_shapes=[
                pltpu.VMEM((n_pad, d_pad), jnp.float32),   # f32 residual carrier
                pltpu.VMEM((n_pad, d_pad), jnp.bfloat16),  # per-layer XW
            ]),
        compiler_params=pltpu.CompilerParams(
            # Both axes sequential: the row axis carries a cross-layer VMEM
            # dependency, so it cannot be 'parallel' (v7x 2-TC sharding would
            # require CMEM exchange). TODO(synk): split rows across TCs via
            # core_map + CMEM for very large N on v7x.
            dimension_semantics=("arbitrary", "arbitrary"),
            vmem_limit_bytes=32 * 1024 * 1024),
        cost_estimate=pl.CostEstimate(
            flops=flops,
            transcendentals=n_pad if l2norm else 0,
            bytes_accessed=bytes_accessed),
    )(xp, ap, wp, bp)

    return out[:n, :d_out]


def gnn_stack_stage_ref(x, a_hat, params, *, stage_type="skipsum", l2norm=True):
    """Pure-JAX f32 reference of GNNStackStage.forward."""
    h = x
    for (w, b) in params:
        out = jnp.maximum(a_hat @ (h @ w) + b, 0.0)
        h = h + out if stage_type == "skipsum" else out
    if l2norm:
        nrm = jnp.maximum(jnp.linalg.norm(h, axis=-1, keepdims=True), 1e-12)
        h = h / nrm
    return h


def make_params(key, dim_in, dim_out, num_layers, dtype=jnp.float32):
    params = []
    d_in = dim_in
    for _ in range(num_layers):
        key, kw = jax.random.split(key)
        w = (jax.random.normal(kw, (d_in, dim_out), dtype=jnp.float32)
             / jnp.sqrt(jnp.float32(d_in))).astype(dtype)
        b = jnp.zeros((1, dim_out), dtype=dtype)
        params.append((w, b))
        d_in = dim_out  # stage_type != 'skipconcat'
    return params


def make_normalized_adjacency(n, dtype=jnp.float32):
    """Ring graph + self loops, symmetric normalization: D^-1/2 (A + I) D^-1/2."""
    idx = jnp.arange(n)
    a = jnp.zeros((n, n), dtype=jnp.float32)
    a = a.at[idx, (idx + 1) % n].set(1.0)
    a = a.at[idx, (idx - 1) % n].set(1.0)
    a = a + jnp.eye(n, dtype=jnp.float32)
    deg = jnp.sum(a, axis=-1)
    d_inv_sqrt = 1.0 / jnp.sqrt(deg)
    a_hat = a * d_inv_sqrt[:, None] * d_inv_sqrt[None, :]
    return a_hat.astype(dtype)


if __name__ == "__main__":
    N = 256           # number of nodes (2 row tiles of 128)
    DIM_IN = 32       # dim_in == dim_out so that 'skipsum' residual is well defined
    DIM_OUT = 32
    NUM_LAYERS = 3

    key = jax.random.PRNGKey(0)
    key, kx = jax.random.split(key)
    x = jax.random.normal(kx, (N, DIM_IN), dtype=jnp.float32)
    a_hat = make_normalized_adjacency(N)
    params = make_params(key, DIM_IN, DIM_OUT, NUM_LAYERS)

    out = gnn_stack_stage(x, a_hat, params, stage_type="skipsum", l2norm=True)
    out = jax.block_until_ready(out)

    ref = gnn_stack_stage_ref(x, a_hat, params, stage_type="skipsum", l2norm=True)

    assert out.shape == (N, DIM_OUT)
    assert bool(jnp.all(jnp.isfinite(out)))
    # Final rows should be (approximately) unit-norm due to l2norm.
    norms = jnp.linalg.norm(out, axis=-1)
    assert bool(jnp.all(jnp.abs(norms - 1.0) < 1e-3))
    # bf16 storage vs f32 reference: loose tolerance.
    max_err = float(jnp.max(jnp.abs(out - ref)))
    assert max_err < 5e-2, f"max abs err {max_err}"
    print("KERNEL_OK")
</pallas_src>

<mosaic_0001>
module attributes {stable_mosaic.version = 11 : i64} {
  func.func @_gnn_stack_kernel(%arg0: i32, %arg1: i32, %arg2: memref<256x128xbf16, #tpu.memory_space<vmem>>, %arg3: memref<256x256xbf16, #tpu.memory_space<vmem>>, %arg4: memref<1x128x128xbf16, #tpu.memory_space<vmem>>, %arg5: memref<1x1x128xf32, #tpu.memory_space<vmem>>, %arg6: memref<256x128xf32, #tpu.memory_space<vmem>>, %arg7: memref<256x128xf32, #tpu.memory_space<vmem>>, %arg8: memref<256x128xbf16, #tpu.memory_space<vmem>>) attributes {dimension_semantics = [#tpu.dimension_semantics<arbitrary>, #tpu.dimension_semantics<arbitrary>], iteration_bounds = array<i64: 3, 2>, scalar_prefetch = 0 : i64, scratch_operands = 2 : i64, tpu.core_type = #tpu.core_type<tc>, window_params = [{pipeline_mode = #tpu.pipeline_mode<synchronous>, transform_indices = @transform_0, window_bounds = array<i64: 256, 128>}, {pipeline_mode = #tpu.pipeline_mode<synchronous>, transform_indices = @transform_1, window_bounds = array<i64: 256, 256>}, {transform_indices = @transform_2, window_bounds = array<i64: 1, 128, 128>}, {transform_indices = @transform_3, window_bounds = array<i64: 1, 1, 128>}, {pipeline_mode = #tpu.pipeline_mode<synchronous>, transform_indices = @transform_4, window_bounds = array<i64: 256, 128>}]} {
    %c0_i32 = arith.constant 0 : i32
    %0 = arith.cmpi eq, %arg0, %c0_i32 : i32
    %c0_i32_0 = arith.constant 0 : i32
    %1 = arith.cmpi eq, %arg1, %c0_i32_0 : i32
    %2 = arith.andi %0, %1 : i1
    %3 = arith.extui %2 : i1 to i32
    %c0_i32_1 = arith.constant 0 : i32
    %4 = arith.cmpi ne, %3, %c0_i32_1 : i32
    scf.if %4 {
      %c0_13 = arith.constant 0 : index
      %c0_14 = arith.constant 0 : index
      %28 = vector.load %arg2[%c0_13, %c0_14] : memref<256x128xbf16, #tpu.memory_space<vmem>>, vector<256x128xbf16>
      %29 = arith.extf %28 : vector<256x128xbf16> to vector<256x128xf32>
      %c0_15 = arith.constant 0 : index
      %c0_16 = arith.constant 0 : index
      %30 = vector.load %arg7[%c0_15, %c0_16] : memref<256x128xf32, #tpu.memory_space<vmem>>, vector<256x128xf32>
      tpu.vector_store %arg7[%c0_15, %c0_16], %29 {strides = array<i32>} : memref<256x128xf32, #tpu.memory_space<vmem>>, vector<256x128xf32>,
    } else {
    }
    %c0_i32_2 = arith.constant 0 : i32
    %5 = arith.cmpi eq, %arg1, %c0_i32_2 : i32
    %6 = arith.extui %5 : i1 to i32
    %c0_i32_3 = arith.constant 0 : i32
    %7 = arith.cmpi ne, %6, %c0_i32_3 : i32
    scf.if %7 {
      %c0_13 = arith.constant 0 : index
      %c0_14 = arith.constant 0 : index
      %28 = vector.load %arg7[%c0_13, %c0_14] : memref<256x128xf32, #tpu.memory_space<vmem>>, vector<256x128xf32>
      %29 = arith.truncf %28 : vector<256x128xf32> to vector<256x128xbf16>
      %c0_15 = arith.constant 0 : index
      %c0_16 = arith.constant 0 : index
      %c0_17 = arith.constant 0 : index
      %30 = vector.load %arg4[%c0_15, %c0_16, %c0_17] : memref<1x128x128xbf16, #tpu.memory_space<vmem>>, vector<1x128x128xbf16>
      %31 = vector.shape_cast %30 : vector<1x128x128xbf16> to vector<128x128xbf16>
      %cst_18 = arith.constant dense<0.000000e+00> : vector<256x128xf32>
      %32 = tpu.matmul %29, %31, %cst_18 {dimension_numbers = #tpu.dot_dimension_numbers<[1], [0], [0], [1], [0, 0, 1, 1], [], []>} : vector<256x128xbf16>, vector<128x128xbf16>, vector<256x128xf32> -> vector<256x128xf32>
      %33 = arith.truncf %32 : vector<256x128xf32> to vector<256x128xbf16>
      %c0_19 = arith.constant 0 : index
      %c0_20 = arith.constant 0 : index
      %34 = vector.load %arg8[%c0_19, %c0_20] : memref<256x128xbf16, #tpu.memory_space<vmem>>, vector<256x128xbf16>
      tpu.vector_store %arg8[%c0_19, %c0_20], %33 {strides = array<i32>} : memref<256x128xbf16, #tpu.memory_space<vmem>>, vector<256x128xbf16>,
    } else {
    }
    %c128_i32 = arith.constant 128 : i32
    %8 = arith.muli %arg1, %c128_i32 : i32
    %9 = tpu.assume_multiple %8, 128 : i32
    %10 = arith.index_cast %9 : i32 to index
    %c0 = arith.constant 0 : index
    %11 = vector.load %arg3[%10, %c0] : memref<256x256xbf16, #tpu.memory_space<vmem>>, vector<128x256xbf16>
    %c0_4 = arith.constant 0 : index
    %c0_5 = arith.constant 0 : index
    %12 = vector.load %arg8[%c0_4, %c0_5] : memref<256x128xbf16, #tpu.memory_space<vmem>>, vector<256x128xbf16>
    %cst = arith.constant dense<0.000000e+00> : vector<128x128xf32>
    %13 = tpu.matmul %11, %12, %cst {dimension_numbers = #tpu.dot_dimension_numbers<[1], [0], [0], [1], [0, 0, 1, 1], [], []>} : vector<128x256xbf16>, vector<256x128xbf16>, vector<128x128xf32> -> vector<128x128xf32>
    %c0_6 = arith.constant 0 : index
    %c0_7 = arith.constant 0 : index
    %c0_8 = arith.constant 0 : index
    %14 = vector.load %arg5[%c0_6, %c0_7, %c0_8] : memref<1x1x128xf32, #tpu.memory_space<vmem>>, vector<1x1x128xf32>
    %15 = vector.shape_cast %14 : vector<1x1x128xf32> to vector<1x128xf32>
    %16 = vector.broadcast %15 : vector<1x128xf32> to vector<128x128xf32>
    %17 = arith.addf %13, %16 : vector<128x128xf32>
    %cst_9 = arith.constant 0.000000e+00 : f32
    %18 = vector.broadcast %cst_9 : f32 to vector<128x128xf32>
    %19 = arith.maximumf %17, %18 : vector<128x128xf32>
    %20 = arith.index_cast %9 : i32 to index
    %c0_10 = arith.constant 0 : index
    %21 = vector.load %arg7[%20, %c0_10] : memref<256x128xf32, #tpu.memory_space<vmem>>, vector<128x128xf32>
    %22 = arith.addf %21, %19 : vector<128x128xf32>
    %23 = arith.index_cast %9 : i32 to index
    %c0_11 = arith.constant 0 : index
    %24 = vector.load %arg7[%23, %c0_11] : memref<256x128xf32, #tpu.memory_space<vmem>>, vector<128x128xf32>
    tpu.vector_store %arg7[%23, %c0_11], %22 {strides = array<i32>} : memref<256x128xf32, #tpu.memory_space<vmem>>, vector<128x128xf32>,
    %c2_i32 = arith.constant 2 : i32
    %25 = arith.cmpi eq, %arg0, %c2_i32 : i32
    %26 = arith.extui %25 : i1 to i32
    %c0_i32_12 = arith.constant 0 : i32
    %27 = arith.cmpi ne, %26, %c0_i32_12 : i32
    scf.if %27 {
      %28 = arith.mulf %22, %22 : vector<128x128xf32>
      %cst_13 = arith.constant dense<0.000000e+00> : vector<128xf32>
      %29 = vector.multi_reduction <add>, %28, %cst_13 [1] : vector<128x128xf32> to vector<128xf32>
      %30 = vector.shape_cast %29 : vector<128xf32> to vector<128x1xf32>
      %cst_14 = arith.constant 1.000000e-24 : f32
      %31 = vector.broadcast %cst_14 : f32 to vector<128x1xf32>
      %32 = arith.maximumf %30, %31 : vector<128x1xf32>
      %33 = math.rsqrt %32 : vector<128x1xf32>
      %34 = vector.broadcast %33 : vector<128x1xf32> to vector<128x128xf32>
      %35 = arith.mulf %22, %34 : vector<128x128xf32>
      %36 = arith.index_cast %9 : i32 to index
      %c0_15 = arith.constant 0 : index
      %37 = vector.load %arg6[%36, %c0_15] : memref<256x128xf32, #tpu.memory_space<vmem>>, vector<128x128xf32>
      tpu.vector_store %arg6[%36, %c0_15], %35 {strides = array<i32>} : memref<256x128xf32, #tpu.memory_space<vmem>>, vector<128x128xf32>,
    } else {
    }
    return
  }
  func.func @transform_0(%arg0: i32, %arg1: i32) -> (i32, i32) {
    %c0_i32 = arith.constant 0 : i32
    %c0_i32_0 = arith.constant 0 : i32
    %c0_i32_1 = arith.constant 0 : i32
    return %c0_i32, %c0_i32_0 : i32, i32
  }
  func.func @transform_1(%arg0: i32, %arg1: i32) -> (i32, i32) {
    %c0_i32 = arith.constant 0 : i32
    %c0_i32_0 = arith.constant 0 : i32
    %c0_i32_1 = arith.constant 0 : i32
    return %c0_i32, %c0_i32_0 : i32, i32
  }
  func.func @transform_2(%arg0: i32, %arg1: i32) -> (i32, i32, i32) {
    %c0_i32 = arith.constant 0 : i32
    %c0_i32_0 = arith.constant 0 : i32
    %c0_i32_1 = arith.constant 0 : i32
    return %arg0, %c0_i32, %c0_i32_0 : i32, i32, i32
  }
  func.func @transform_3(%arg0: i32, %arg1: i32) -> (i32, i32, i32) {
    %c0_i32 = arith.constant 0 : i32
    %c0_i32_0 = arith.constant 0 : i32
    %c0_i32_1 = arith.constant 0 : i32
    return %arg0, %c0_i32, %c0_i32_0 : i32, i32, i32
  }
  func.func @transform_4(%arg0: i32, %arg1: i32) -> (i32, i32) {
    %c0_i32 = arith.constant 0 : i32
    %c0_i32_0 = arith.constant 0 : i32
    %c0_i32_1 = arith.constant 0 : i32
    return %c0_i32, %c0_i32_0 : i32, i32
  }
}

</mosaic_0001>

<llo_original>
// kernel: tpu_custom_call.1
$region0: #{tpu_custom_call.1}
  #allocation0 [shape = 'u32[]', space=smem, size = 0x4, offset = 0x4, fixed_abs, tag = 'smem constant byte address 0x4 - core index']
  #allocation1 [shape = 'u32[144,128]{1,0:T(1,128)}', space=vmem, size = 0x12000, scoped, tag = 'internal scratch']
  #allocation2 [shape = 'f32[256,128]{1,0:T(8,128)}', space=vmem, size = 0x20000, scoped, tag = 'scratch operand']
  #allocation3 [shape = 'bf16[256,128]{1,0:T(8,128)(2,1)}', space=vmem, size = 0x10000, scoped, tag = 'scratch operand']
  %s0 = inlined_call_operand.hbm [shape: bf16[256,128], index: 0, kind: input, shape index: {}]
  %s1 = inlined_call_operand.hbm [shape: bf16[256,256], index: 1, kind: input, shape index: {}]
  %s2 = inlined_call_operand.hbm [shape: bf16[3,128,128], index: 2, kind: input, shape index: {}]
  %s3 = inlined_call_operand.vmem [shape: f32[3,1,128], index: 3, kind: input, shape index: {}]
  %s4 = inlined_call_operand.hbm [shape: f32[256,128], index: 4, kind: output, shape index: {}]
  %s5 = sld [smem:[#allocation0]]
  $region73: #{tpu_custom_call.1} parent=0
    _
  %s7 = ssub.s32 1, %s5
  %s8 = scalar_select 0, %s7, %s5
  $region1: #{tpu_custom_call.1} parent=0
    #allocation4 [shape = 'u8[65536]{0}', space=vmem, size = 0x10000, scoped, tag = 'input window, operand 0, single buffered']
    #allocation5 [shape = 's32[2]{0}', space=sflag, size = 0x8, scoped, tag = 'scoped memory for tpu_custom_call.1']
    #allocation6 [shape = 's32[2]{0}', space=sflag, size = 0x8, scoped, tag = 'scoped memory for tpu_custom_call.1']
    #allocation7 [shape = 'u8[131072]{0}', space=vmem, size = 0x20000, scoped, tag = 'input window, operand 1, single buffered']
    #allocation8 [shape = 's32[1]{0}', space=sflag, size = 0x4, scoped, tag = 'scoped memory for tpu_custom_call.1']
    #allocation9 [shape = 'u8[65536]{0}', space=vmem, size = 0x10000, scoped, tag = 'input window, operand 2']
    #allocation10 [shape = 'u8[131072]{0}', space=vmem, size = 0x20000, scoped, tag = 'output window, operand 0, single buffered']
    %9 = vsyncpa [#allocation5], 0
    %10 = vsyncpa [#allocation8], 0
    %11 = vsyncpa [#allocation6], 0
    loop: start=0, step=1, limit=8
    $region2: #{tpu_custom_call.1} parent=1 // loop_pre_header
      _
    $region3: #{tpu_custom_call.1} parent=1 // loop_header
      %s13 = sphi 0, %s17
      %p14 = scmp.ge.s32.totalorder %s13, 8
      %s20 = sphi 0, %s32
      %s21 = sphi 0, %s28
      %s22 = sphi 0, %s20
      %s23 = sphi 0, %s21
      %s24 = sphi 0, %s22
      %s25 = sphi 0, %s23
      %s33 = sphi 0, %s33
      %s35 = sphi 0, %s33
      %s36 = sphi 0, %s35
      %s50 = sphi 0, %s36
      %s54 = sphi 0, %s54
      %s56 = sphi 0, %s54
      %s57 = sphi 0, %s56
      %s71 = sphi 0, %s57
      %s77 = sphi 0, %s79
      %s80 = sphi 0, %s77
      %s81 = sphi 0, %s80
      %s97 = sphi 0, %s81
      %s103 = sphi 0, %s105
      %s106 = sphi 0, %s103
      %s107 = sphi 0, %s106
      %s123 = sphi 0, %s107
      %s127 = sphi 0, %s127
      %s129 = sphi 0, %s127
      %s130 = sphi 0, %s129
      %s144 = sphi 0, %s130
    $region4: #{tpu_custom_call.1} parent=1 // loop_header_branch
      %16 = sbr.rel (%p14) target = $region8
    $region5: #{tpu_custom_call.1} parent=1 // loop_body
      %s18 = ssub.s32 %s13, 1
      %s19 = ssub.s32 %s13, 2
      %s26 = sadd.s32 1, %s21
      %p27 = scmp.ge.s32.totalorder %s26, 2
      %s28 = scalar_select %p27, 0, %s26
      %s29 = sadd.s32 1, %s20
      %s30 = scalar_select %p27, %s29, %s20
      %p31 = scmp.ge.s32.totalorder %s30, 3
      %s32 = scalar_select %p31, 0, %s30
      %s34 = sadd.s32 %s33, 1
      %p37 = scmp.eq.s32.totalorder %s13, 5
      %p38 = scmp.ne.s32.totalorder %s33, %s35
      %p39 = scmp.eq.s32.totalorder %s13, 0
      %p40 = por %p38, %p39
      %p41 = scmp.ne.s32.totalorder %s33, %s35
      %p42 = scmp.eq.s32.totalorder %s18, 5
      %p43 = por %p41, %p42
      %p44 = scmp.ne.s32.totalorder %s35, %s36
      %p45 = scmp.eq.s32.totalorder %s18, 0
      %p46 = por %p44, %p45
      %p47 = scmp.ne.s32.totalorder %s35, %s36
      %p48 = scmp.eq.s32.totalorder %s19, 5
      %p49 = por %p47, %p48
      %p51 = scmp.ne.s32.totalorder %s36, %s50
      %p52 = scmp.eq.s32.totalorder %s19, 0
      %p53 = por %p51, %p52
      %s55 = sadd.s32 %s54, 1
      %p58 = scmp.eq.s32.totalorder %s13, 5
      %p59 = scmp.ne.s32.totalorder %s54, %s56
      %p60 = scmp.eq.s32.totalorder %s13, 0
      %p61 = por %p59, %p60
      %p62 = scmp.ne.s32.totalorder %s54, %s56
      %p63 = scmp.eq.s32.totalorder %s18, 5
      %p64 = por %p62, %p63
      %p65 = scmp.ne.s32.totalorder %s56, %s57
      %p66 = scmp.eq.s32.totalorder %s18, 0
      %p67 = por %p65, %p66
      %p68 = scmp.ne.s32.totalorder %s56, %s57
      %p69 = scmp.eq.s32.totalorder %s19, 5
      %p70 = por %p68, %p69
      %p72 = scmp.ne.s32.totalorder %s57, %s71
      %p73 = scmp.eq.s32.totalorder %s19, 0
      %p74 = por %p72, %p73
      %s75 = ssub.s32 %s20, %s32
      %p76 = scmp.eq.s32.totalorder %s75, 0
      %s78 = sadd.s32 %s77, 1
      %s79 = scalar_select %p76, %s77, %s78
      %p82 = pneg %p76
      %p83 = scmp.eq.s32.totalorder %s13, 5
      %p84 = por %p82, %p83
      %p85 = scmp.ne.s32.totalorder %s77, %s80
      %p86 = scmp.eq.s32.totalorder %s13, 0
      %p87 = por %p85, %p86
      %p88 = scmp.ne.s32.totalorder %s77, %s80
      %p89 = scmp.eq.s32.totalorder %s18, 5
      %p90 = por %p88, %p89
      %p91 = scmp.ne.s32.totalorder %s80, %s81
      %p92 = scmp.eq.s32.totalorder %s18, 0
      %p93 = por %p91, %p92
      %p94 = scmp.ne.s32.totalorder %s80, %s81
      %p95 = scmp.eq.s32.totalorder %s19, 5
      %p96 = por %p94, %p95
      %p98 = scmp.ne.s32.totalorder %s81, %s97
      %p99 = scmp.eq.s32.totalorder %s19, 0
      %p100 = por %p98, %p99
      %s101 = ssub.s32 %s20, %s32
      %p102 = scmp.eq.s32.totalorder %s101, 0
      %s104 = sadd.s32 %s103, 1
      %s105 = scalar_select %p102, %s103, %s104
      %p108 = pneg %p102
      %p109 = scmp.eq.s32.totalorder %s13, 5
      %p110 = por %p108, %p109
      %p111 = scmp.ne.s32.totalorder %s103, %s106
      %p112 = scmp.eq.s32.totalorder %s13, 0
      %p113 = por %p111, %p112
      %p114 = scmp.ne.s32.totalorder %s103, %s106
      %p115 = scmp.eq.s32.totalorder %s18, 5
      %p116 = por %p114, %p115
      %p117 = scmp.ne.s32.totalorder %s106, %s107
      %p118 = scmp.eq.s32.totalorder %s18, 0
      %p119 = por %p117, %p118
      %p120 = scmp.ne.s32.totalorder %s106, %s107
      %p121 = scmp.eq.s32.totalorder %s19, 5
      %p122 = por %p120, %p121
      %p124 = scmp.ne.s32.totalorder %s107, %s123
      %p125 = scmp.eq.s32.totalorder %s19, 0
      %p126 = por %p124, %p125
      %s128 = sadd.s32 %s127, 1
      %p131 = scmp.eq.s32.totalorder %s13, 5
      %p132 = scmp.ne.s32.totalorder %s127, %s129
      %p133 = scmp.eq.s32.totalorder %s13, 0
      %p134 = por %p132, %p133
      %p135 = scmp.ne.s32.totalorder %s127, %s129
      %p136 = scmp.eq.s32.totalorder %s18, 5
      %p137 = por %p135, %p136
      %p138 = scmp.ne.s32.totalorder %s129, %s130
      %p139 = scmp.eq.s32.totalorder %s18, 0
      %p140 = por %p138, %p139
      %p141 = scmp.ne.s32.totalorder %s129, %s130
      %p142 = scmp.eq.s32.totalorder %s19, 5
      %p143 = por %p141, %p142
      %p145 = scmp.ne.s32.totalorder %s130, %s144
      %p146 = scmp.eq.s32.totalorder %s19, 0
      %p147 = por %p145, %p146
      %p148 = scmp.le.s32.totalorder 1, %s13
      %p149 = scmp.lt.s32.totalorder %s13, 7
      %p150 = pnand %p148, %p149
      %p151 = pneg %p150
      // Predicated region
      $region9: #{tpu_custom_call.1} parent=5 // pred_check
        _
      $region10: #{tpu_custom_call.1} parent=5 // pred_check_branch
        %153 = sbr.rel (%p150) target = $region12
      $region11: #{tpu_custom_call.1} parent=5 // pred_region
        %s154 = ssub.s32 %s13, 1
        // Predicated region
        $region13: #{tpu_custom_call.1} parent=11 // pred_check
          %p155 = pneg %p46
        $region14: #{tpu_custom_call.1} parent=11 // pred_check_branch
          %157 = sbr.rel (%p155) target = $region16
        $region15: #{tpu_custom_call.1} parent=11 // pred_region
          %s159 = ssub.s32 2048, 2048
          %160 = vsyncadd [#allocation5], %s159
          %s161 = sshll.u32 [#allocation4], 4
          %s162 = int_to_ptr.vmem [resolvable:$true] %s161
          %167 = dma.hbm_to_vmem [thread:$0]  %s0, 2048, %s162, [#allocation5], 64, 64, 4
        $region16: #{tpu_custom_call.1} parent=11 // pred_fallthru
          _
        // Predicated region
        $region17: #{tpu_custom_call.1} parent=11 // pred_check
          %p168 = pneg %p67
        $region18: #{tpu_custom_call.1} parent=11 // pred_check_branch
          %170 = sbr.rel (%p168) target = $region20
        $region19: #{tpu_custom_call.1} parent=11 // pred_region
          %s172 = ssub.s32 4096, 4096
          %173 = vsyncadd [#allocation8], %s172
          %s174 = sshll.u32 [#allocation7], 4
          %s175 = int_to_ptr.vmem [resolvable:$true] %s174
          %180 = dma.hbm_to_vmem [thread:$0]  %s1, 4096, %s175, [#allocation8], 128, 128, 8
        $region20: #{tpu_custom_call.1} parent=11 // pred_fallthru
          _
      $region12: #{tpu_custom_call.1} parent=5 // pred_fallthru
        _
      %p181 = scmp.lt.s32.totalorder %s13, 6
      // Predicated region
      $region21: #{tpu_custom_call.1} parent=5 // pred_check
        %p182 = pneg %p181
      $region22: #{tpu_custom_call.1} parent=5 // pred_check_branch
        %184 = sbr.rel (%p182) target = $region24
      $region23: #{tpu_custom_call.1} parent=5 // pred_region
        // Predicated region
        $region25: #{tpu_custom_call.1} parent=23 // pred_check
          %p185 = pneg %p87
        $region26: #{tpu_custom_call.1} parent=23 // pred_check_branch
          %187 = sbr.rel (%p185) target = $region28
        $region27: #{tpu_custom_call.1} parent=23 // pred_region
          %s188 = sand.u32 %s13, 1
          %s189 = scalar_lea.sflag [#allocation5], %s188
          %s190 = sand.u32 %s77, 1
          %s191 = smul.addr %s190, 64
          %s192 = scalar_lea.vmem [#allocation9], %s191
          %s194 = ssub.s32 1024, 1024
          %195 = vsyncadd %s189, %s194
          %s196 = smul.addr %s20, 16
          %s197 = smul.addr %s196, 64
          %s198 = scalar_lea.hbm %s2, %s197
          %s199 = sshll.u32 %s192, 4
          %s200 = int_to_ptr.vmem [resolvable:$true] %s199
          %205 = dma.hbm_to_vmem [thread:$0]  %s198, 1024, %s200, %s189, 64, 64, 4
        $region28: #{tpu_custom_call.1} parent=23 // pred_fallthru
          _
        // Predicated region
        $region29: #{tpu_custom_call.1} parent=23 // pred_check
          %p206 = pneg %p113
        $region30: #{tpu_custom_call.1} parent=23 // pred_check_branch
          %208 = sbr.rel (%p206) target = $region32
        $region31: #{tpu_custom_call.1} parent=23 // pred_region
          %p209 = scmp.lt.s32.totalorder %s20, 2
          %s210 = scalar_select %p209, %s20, 2
          %s211 = scalar_lea.vmem %s3, %s210
        $region32: #{tpu_custom_call.1} parent=23 // pred_fallthru
          _
      $region24: #{tpu_custom_call.1} parent=5 // pred_fallthru
        _
      %p212 = scmp.le.s32.totalorder 1, %s13
      %p213 = scmp.lt.s32.totalorder %s13, 7
      %p214 = pnand %p212, %p213
      %p215 = pneg %p214
      // Predicated region
      $region33: #{tpu_custom_call.1} parent=5 // pred_check
        _
      $region34: #{tpu_custom_call.1} parent=5 // pred_check_branch
        %217 = sbr.rel (%p214) target = $region36
      $region35: #{tpu_custom_call.1} parent=5 // pred_region
        %s218 = ssub.s32 %s13, 1
        // Predicated region
        $region37: #{tpu_custom_call.1} parent=35 // pred_check
          %p219 = pneg %p46
        $region38: #{tpu_custom_call.1} parent=35 // pred_check_branch
          %221 = sbr.rel (%p219) target = $region40
        $region39: #{tpu_custom_call.1} parent=35 // pred_region
          %222 = dma.done [#allocation5], 2048
        $region40: #{tpu_custom_call.1} parent=35 // pred_fallthru
          _
        // Predicated region
        $region41: #{tpu_custom_call.1} parent=35 // pred_check
          %p223 = pneg %p67
        $region42: #{tpu_custom_call.1} parent=35 // pred_check_branch
          %225 = sbr.rel (%p223) target = $region44
        $region43: #{tpu_custom_call.1} parent=35 // pred_region
          %226 = dma.done [#allocation8], 4096
        $region44: #{tpu_custom_call.1} parent=35 // pred_fallthru
          _
        %s227 = sand.u32 %s18, 1
        %s228 = scalar_lea.sflag [#allocation5], %s227
        %s229 = sand.u32 %s80, 1
        %s230 = smul.addr %s229, 64
        %s231 = scalar_lea.vmem [#allocation9], %s230
        // Predicated region
        $region45: #{tpu_custom_call.1} parent=35 // pred_check
          %p232 = pneg %p93
        $region46: #{tpu_custom_call.1} parent=35 // pred_check_branch
          %234 = sbr.rel (%p232) target = $region48
        $region47: #{tpu_custom_call.1} parent=35 // pred_region
          %235 = dma.done %s228, 1024
        $region48: #{tpu_custom_call.1} parent=35 // pred_fallthru
          _
        %p236 = pneg %p46
        %p237 = pneg %p43
        %p238 = pneg %p67
        %p239 = pneg %p64
        %s240 = sand.u32 %s18, 1
        %s241 = scalar_lea.sflag [#allocation5], %s240
        %s242 = sand.u32 %s80, 1
        %s243 = smul.addr %s242, 64
        %s244 = scalar_lea.vmem [#allocation9], %s243
        %p245 = pneg %p93
        %p246 = pneg %p90
        %p247 = scmp.lt.s32.totalorder %s22, 2
        %s248 = scalar_select %p247, %s22, 2
        %s249 = scalar_lea.vmem %s3, %s248
        %p250 = pneg %p119
        %p251 = pneg %p116
        %p252 = pneg %p140
        %p253 = pneg %p137
        %p254 = scmp.lt.s32.totalorder %s22, 2
        %s255 = scalar_select %p254, %s22, 2
        %s256 = scalar_lea.vmem %s3, %s255
        %p258 = scmp.eq.s32.totalorder %s22, 0
        %p259 = scmp.eq.s32.totalorder %s23, 0
        %p260 = pnand %p258, %p259
        %p261 = pneg %p260
        // Predicated region
        $region49: #{tpu_custom_call.1} parent=35 // pred_check
          _
        $region50: #{tpu_custom_call.1} parent=35 // pred_check_branch
          %263 = sbr.rel (%p260) target = $region52
        $region51: #{tpu_custom_call.1} parent=35 // pred_region
          %v264 = vld [vmem:[#allocation4] sm:$0xf]
          %v265 = vld [vmem:[#allocation4 + $0x4] sm:$0xf]
          %v266 = vld [vmem:[#allocation4 + $0x8] sm:$0xf]
          %v267 = vld [vmem:[#allocation4 + $0xc] sm:$0xf]
          %v268 = vld [vmem:[#allocation4 + $0x10] sm:$0xf]
          %v269 = vld [vmem:[#allocation4 + $0x14] sm:$0xf]
          %v270 = vld [vmem:[#allocation4 + $0x18] sm:$0xf]
          %v271 = vld [vmem:[#allocation4 + $0x1c] sm:$0xf]
          %v272 = vld [vmem:[#allocation4 + $0x20] sm:$0xf]
          %v273 = vld [vmem:[#allocation4 + $0x24] sm:$0xf]
          %v274 = vld [vmem:[#allocation4 + $0x28] sm:$0xf]
          %v275 = vld [vmem:[#allocation4 + $0x2c] sm:$0xf]
          %v276 = vld [vmem:[#allocation4 + $0x30] sm:$0xf]
          %v277 = vld [vmem:[#allocation4 + $0x34] sm:$0xf]
          %v278 = vld [vmem:[#allocation4 + $0x38] sm:$0xf]
          %v279 = vld [vmem:[#allocation4 + $0x3c] sm:$0xf]
          %v280 = vld [vmem:[#allocation4 + $0x40] sm:$0xf]
          %v281 = vld [vmem:[#allocation4 + $0x44] sm:$0xf]
          %v282 = vld [vmem:[#allocation4 + $0x48] sm:$0xf]
          %v283 = vld [vmem:[#allocation4 + $0x4c] sm:$0xf]
          %v284 = vld [vmem:[#allocation4 + $0x50] sm:$0xf]
          %v285 = vld [vmem:[#allocation4 + $0x54] sm:$0xf]
          %v286 = vld [vmem:[#allocation4 + $0x58] sm:$0xf]
          %v287 = vld [vmem:[#allocation4 + $0x5c] sm:$0xf]
          %v288 = vld [vmem:[#allocation4 + $0x60] sm:$0xf]
          %v289 = vld [vmem:[#allocation4 + $0x64] sm:$0xf]
          %v290 = vld [vmem:[#allocation4 + $0x68] sm:$0xf]
          %v291 = vld [vmem:[#allocation4 + $0x6c] sm:$0xf]
          %v292 = vld [vmem:[#allocation4 + $0x70] sm:$0xf]
          %v293 = vld [vmem:[#allocation4 + $0x74] sm:$0xf]
          %v294 = vld [vmem:[#allocation4 + $0x78] sm:$0xf]
          %v295 = vld [vmem:[#allocation4 + $0x7c] sm:$0xf]
          %v296 = vunpack.c.l.bf16 %v264
          %v297 = vunpack.c.l.bf16 %v265
          %v298 = vunpack.c.l.bf16 %v266
          %v299 = vunpack.c.l.bf16 %v267
          %v300 = vunpack.c.l.bf16 %v268
          %v301 = vunpack.c.l.bf16 %v269
          %v302 = vunpack.c.l.bf16 %v270
          %v303 = vunpack.c.l.bf16 %v271
          %v304 = vunpack.c.l.bf16 %v272
          %v305 = vunpack.c.l.bf16 %v273
          %v306 = vunpack.c.l.bf16 %v274
          %v307 = vunpack.c.l.bf16 %v275
          %v308 = vunpack.c.l.bf16 %v276
          %v309 = vunpack.c.l.bf16 %v277
          %v310 = vunpack.c.l.bf16 %v278
          %v311 = vunpack.c.l.bf16 %v279
          %v312 = vunpack.c.l.bf16 %v280
          %v313 = vunpack.c.l.bf16 %v281
          %v314 = vunpack.c.l.bf16 %v282
          %v315 = vunpack.c.l.bf16 %v283
          %v316 = vunpack.c.l.bf16 %v284
          %v317 = vunpack.c.l.bf16 %v285
          %v318 = vunpack.c.l.bf16 %v286
          %v319 = vunpack.c.l.bf16 %v287
          %v320 = vunpack.c.l.bf16 %v288
          %v321 = vunpack.c.l.bf16 %v289
          %v322 = vunpack.c.l.bf16 %v290
          %v323 = vunpack.c.l.bf16 %v291
          %v324 = vunpack.c.l.bf16 %v292
          %v325 = vunpack.c.l.bf16 %v293
          %v326 = vunpack.c.l.bf16 %v294
          %v327 = vunpack.c.l.bf16 %v295
          %328 = vst [vmem:[#allocation2] sm:$0xff] %v296
          %329 = vst [vmem:[#allocation2 + $0x8] sm:$0xff] %v297
          %330 = vst [vmem:[#allocation2 + $0x10] sm:$0xff] %v298
          %331 = vst [vmem:[#allocation2 + $0x18] sm:$0xff] %v299
          %332 = vst [vmem:[#allocation2 + $0x20] sm:$0xff] %v300
          %333 = vst [vmem:[#allocation2 + $0x28] sm:$0xff] %v301
          %334 = vst [vmem:[#allocation2 + $0x30] sm:$0xff] %v302
          %335 = vst [vmem:[#allocation2 + $0x38] sm:$0xff] %v303
          %336 = vst [vmem:[#allocation2 + $0x40] sm:$0xff] %v304
          %337 = vst [vmem:[#allocation2 + $0x48] sm:$0xff] %v305
          %338 = vst [vmem:[#allocation2 + $0x50] sm:$0xff] %v306
          %339 = vst [vmem:[#allocation2 + $0x58] sm:$0xff] %v307
          %340 = vst [vmem:[#allocation2 + $0x60] sm:$0xff] %v308
          %341 = vst [vmem:[#allocation2 + $0x68] sm:$0xff] %v309
          %342 = vst [vmem:[#allocation2 + $0x70] sm:$0xff] %v310
          %343 = vst [vmem:[#allocation2 + $0x78] sm:$0xff] %v311
          %344 = vst [vmem:[#allocation2 + $0x80] sm:$0xff] %v312
          %345 = vst [vmem:[#allocation2 + $0x88] sm:$0xff] %v313
          %346 = vst [vmem:[#allocation2 + $0x90] sm:$0xff] %v314
          %347 = vst [vmem:[#allocation2 + $0x98] sm:$0xff] %v315
          %348 = vst [vmem:[#allocation2 + $0xa0] sm:$0xff] %v316
          %349 = vst [vmem:[#allocation2 + $0xa8] sm:$0xff] %v317
          %350 = vst [vmem:[#allocation2 + $0xb0] sm:$0xff] %v318
          %351 = vst [vmem:[#allocation2 + $0xb8] sm:$0xff] %v319
          %352 = vst [vmem:[#allocation2 + $0xc0] sm:$0xff] %v320
          %353 = vst [vmem:[#allocation2 + $0xc8] sm:$0xff] %v321
          %354 = vst [vmem:[#allocation2 + $0xd0] sm:$0xff] %v322
          %355 = vst [vmem:[#allocation2 + $0xd8] sm:$0xff] %v323
          %356 = vst [vmem:[#allocation2 + $0xe0] sm:$0xff] %v324
          %357 = vst [vmem:[#allocation2 + $0xe8] sm:$0xff] %v325
          %358 = vst [vmem:[#allocation2 + $0xf0] sm:$0xff] %v326
          %359 = vst [vmem:[#allocation2 + $0xf8] sm:$0xff] %v327
        $region52: #{tpu_custom_call.1} parent=35 // pred_fallthru
          _
        // Predicated region
        $region53: #{tpu_custom_call.1} parent=35 // pred_check
          %p360 = pneg %p259
        $region54: #{tpu_custom_call.1} parent=35 // pred_check_branch
          %362 = sbr.rel (%p360) target = $region56
        $region55: #{tpu_custom_call.1} parent=35 // pred_region
          %v363 = vld [vmem:[#allocation2] sm:$0xff]
          %v364 = vld [vmem:[#allocation2 + $0x8] sm:$0xff]
          %v365 = vld [vmem:[#allocation2 + $0x10] sm:$0xff]
          %v366 = vld [vmem:[#allocation2 + $0x18] sm:$0xff]
          %v367 = vld [vmem:[#allocation2 + $0x20] sm:$0xff]
          %v368 = vld [vmem:[#allocation2 + $0x28] sm:$0xff]
          %v369 = vld [vmem:[#allocation2 + $0x30] sm:$0xff]
          %v370 = vld [vmem:[#allocation2 + $0x38] sm:$0xff]
          %v371 = vld [vmem:[#allocation2 + $0x40] sm:$0xff]
          %v372 = vld [vmem:[#allocation2 + $0x48] sm:$0xff]
          %v373 = vld [vmem:[#allocation2 + $0x50] sm:$0xff]
          %v374 = vld [vmem:[#allocation2 + $0x58] sm:$0xff]
          %v375 = vld [vmem:[#allocation2 + $0x60] sm:$0xff]
          %v376 = vld [vmem:[#allocation2 + $0x68] sm:$0xff]
          %v377 = vld [vmem:[#allocation2 + $0x70] sm:$0xff]
          %v378 = vld [vmem:[#allocation2 + $0x78] sm:$0xff]
          %v379 = vld [vmem:[#allocation2 + $0x80] sm:$0xff]
          %v380 = vld [vmem:[#allocation2 + $0x88] sm:$0xff]
          %v381 = vld [vmem:[#allocation2 + $0x90] sm:$0xff]
          %v382 = vld [vmem:[#allocation2 + $0x98] sm:$0xff]
          %v383 = vld [vmem:[#allocation2 + $0xa0] sm:$0xff]
          %v384 = vld [vmem:[#allocation2 + $0xa8] sm:$0xff]
          %v385 = vld [vmem:[#allocation2 + $0xb0] sm:$0xff]
          %v386 = vld [vmem:[#allocation2 + $0xb8] sm:$0xff]
          %v387 = vld [vmem:[#allocation2 + $0xc0] sm:$0xff]
          %v388 = vld [vmem:[#allocation2 + $0xc8] sm:$0xff]
          %v389 = vld [vmem:[#allocation2 + $0xd0] sm:$0xff]
          %v390 = vld [vmem:[#allocation2 + $0xd8] sm:$0xff]
          %v391 = vld [vmem:[#allocation2 + $0xe0] sm:$0xff]
          %v392 = vld [vmem:[#allocation2 + $0xe8] sm:$0xff]
          %v393 = vld [vmem:[#allocation2 + $0xf0] sm:$0xff]
          %v394 = vld [vmem:[#allocation2 + $0xf8] sm:$0xff]
          %v395 = vpack.c.bf16 %v364, %v363
          %v396 = vpack.c.bf16 %v366, %v365
          %v397 = vpack.c.bf16 %v368, %v367
          %v398 = vpack.c.bf16 %v370, %v369
          %v399 = vpack.c.bf16 %v372, %v371
          %v400 = vpack.c.bf16 %v374, %v373
          %v401 = vpack.c.bf16 %v376, %v375
          %v402 = vpack.c.bf16 %v378, %v377
          %v403 = vpack.c.bf16 %v380, %v379
          %v404 = vpack.c.bf16 %v382, %v381
          %v405 = vpack.c.bf16 %v384, %v383
          %v406 = vpack.c.bf16 %v386, %v385
          %v407 = vpack.c.bf16 %v388, %v387
          %v408 = vpack.c.bf16 %v390, %v389
          %v409 = vpack.c.bf16 %v392, %v391
          %v410 = vpack.c.bf16 %v394, %v393
          %v411 = vld [vmem:[%s231] sm:$0xf]
          %v412 = vld [vmem:[%s231 + $0x4] sm:$0xf]
          %v413 = vld [vmem:[%s231 + $0x8] sm:$0xf]
          %v414 = vld [vmem:[%s231 + $0xc] sm:$0xf]
          %v415 = vld [vmem:[%s231 + $0x10] sm:$0xf]
          %v416 = vld [vmem:[%s231 + $0x14] sm:$0xf]
          %v417 = vld [vmem:[%s231 + $0x18] sm:$0xf]
          %v418 = vld [vmem:[%s231 + $0x1c] sm:$0xf]
          %v419 = vld [vmem:[%s231 + $0x20] sm:$0xf]
          %v420 = vld [vmem:[%s231 + $0x24] sm:$0xf]
          %v421 = vld [vmem:[%s231 + $0x28] sm:$0xf]
          %v422 = vld [vmem:[%s231 + $0x2c] sm:$0xf]
          %v423 = vld [vmem:[%s231 + $0x30] sm:$0xf]
          %v424 = vld [vmem:[%s231 + $0x34] sm:$0xf]
          %v425 = vld [vmem:[%s231 + $0x38] sm:$0xf]
          %v426 = vld [vmem:[%s231 + $0x3c] sm:$0xf]
          %v443 = vunpack.c.l.b16 %v411
          %v444 = vunpack.c.l.b16 %v412
          %v445 = vunpack.c.l.b16 %v413
          %v446 = vunpack.c.l.b16 %v414
          %v447 = vunpack.c.l.b16 %v415
          %v448 = vunpack.c.l.b16 %v416
          %v449 = vunpack.c.l.b16 %v417
          %v450 = vunpack.c.l.b16 %v418
          %v451 = vunpack.c.l.b16 %v419
          %v452 = vunpack.c.l.b16 %v420
          %v453 = vunpack.c.l.b16 %v421
          %v454 = vunpack.c.l.b16 %v422
          %v455 = vunpack.c.l.b16 %v423
          %v456 = vunpack.c.l.b16 %v424
          %v457 = vunpack.c.l.b16 %v425
          %v458 = vunpack.c.l.b16 %v426
          %v459 = vpack.c.b16 %v444, %v443
          %v460 = vpack.c.b16 %v446, %v445
          %v461 = vpack.c.b16 %v448, %v447
          %v462 = vpack.c.b16 %v450, %v449
          %v463 = vpack.c.b16 %v452, %v451
          %v464 = vpack.c.b16 %v454, %v453
          %v465 = vpack.c.b16 %v456, %v455
          %v466 = vpack.c.b16 %v458, %v457
          %475 = vmatprep.subr.bf16.mxu0 0
          %476 = vmatpush1.bf16.msra.mxu0 %v466
          %477 = vmatprep.subr.bf16.mxu0 0
          %478 = vmatpush1.bf16.msra.mxu0 %v465
          %479 = vmatprep.subr.bf16.mxu0 0
          %480 = vmatpush1.bf16.msra.mxu0 %v464
          %481 = vmatprep.subr.bf16.mxu0 0
          %482 = vmatpush1.bf16.msra.mxu0 %v463
          %483 = vmatprep.subr.bf16.mxu0 0
          %484 = vmatpush1.bf16.msra.mxu0 %v462
          %485 = vmatprep.subr.bf16.mxu0 0
          %486 = vmatpush1.bf16.msra.mxu0 %v461
          %487 = vmatprep.subr.bf16.mxu0 0
          %488 = vmatpush1.bf16.msra.mxu0 %v460
          %489 = vmatprep.subr.bf16.mxu0 0
          %490 = vmatpush1.bf16.msra.mxu0 %v459
          %491 = vmatprep.subr.bf16.mxu0 0
          %492 = vmatpush2.bf16.msra.mxu0 0
          %493 = vmatprep.subr.bf16.mxu0 0
          %494 = vmatpush2.bf16.msra.mxu0 0
          %495 = vmatprep.subr.bf16.mxu0 0
          %496 = vmatpush2.bf16.msra.mxu0 0
          %497 = vmatprep.subr.bf16.mxu0 0
          %498 = vmatpush2.bf16.msra.mxu0 0
          %499 = vmatprep.subr.bf16.mxu0 0
          %500 = vmatpush2.bf16.msra.mxu0 0
          %501 = vmatprep.subr.bf16.mxu0 0
          %502 = vmatpush2.bf16.msra.mxu0 0
          %503 = vmatprep.subr.bf16.mxu0 0
          %504 = vmatpush2.bf16.msra.mxu0 0
          %505 = vmatprep.subr.bf16.mxu0 0
          %506 = vmatpush2.bf16.msra.mxu0 0
          %507 = vmatprep.mubr.bf16.mxu0 0
          %508 = vmatmul.mubr.bf16.gmra.mxu0 %v395
          %v509 = vpop.f32.mrf.mxu0
          %v510 = vadd.f32 0.0, %v509
          %v511 = vpop.f32.mrf.mxu0
          %v512 = vpop.f32.mrf.mxu0
          %v513 = vadd.f32 0.0, %v512
          %v514 = vpop.f32.mrf.mxu0
          %515 = vmatprep.mubr.bf16.mxu0 0
          %516 = vmatmul.mubr.bf16.gmra.mxu0 %v396
          %v517 = vpop.f32.mrf.mxu0
          %v518 = vadd.f32 0.0, %v517
          %v519 = vpop.f32.mrf.mxu0
          %v520 = vpop.f32.mrf.mxu0
          %v521 = vadd.f32 0.0, %v520
          %v522 = vpop.f32.mrf.mxu0
          %523 = vmatprep.mubr.bf16.mxu0 0
          %524 = vmatmul.mubr.bf16.gmra.mxu0 %v397
          %v525 = vpop.f32.mrf.mxu0
          %v526 = vadd.f32 0.0, %v525
          %v527 = vpop.f32.mrf.mxu0
          %v528 = vpop.f32.mrf.mxu0
          %v529 = vadd.f32 0.0, %v528
          %v530 = vpop.f32.mrf.mxu0
          %531 = vmatprep.mubr.bf16.mxu0 0
          %532 = vmatmul.mubr.bf16.gmra.mxu0 %v398
          %v533 = vpop.f32.mrf.mxu0
          %v534 = vadd.f32 0.0, %v533
          %v535 = vpop.f32.mrf.mxu0
          %v536 = vpop.f32.mrf.mxu0
          %v537 = vadd.f32 0.0, %v536
          %v538 = vpop.f32.mrf.mxu0
          %539 = vmatprep.mubr.bf16.mxu0 0
          %540 = vmatmul.mubr.bf16.gmra.mxu0 %v399
          %v541 = vpop.f32.mrf.mxu0
          %v542 = vadd.f32 0.0, %v541
          %v543 = vpop.f32.mrf.mxu0
          %v544 = vpop.f32.mrf.mxu0
          %v545 = vadd.f32 0.0, %v544
          %v546 = vpop.f32.mrf.mxu0
          %547 = vmatprep.mubr.bf16.mxu0 0
          %548 = vmatmul.mubr.bf16.gmra.mxu0 %v400
          %v549 = vpop.f32.mrf.mxu0
          %v550 = vadd.f32 0.0, %v549
          %v551 = vpop.f32.mrf.mxu0
          %v552 = vpop.f32.mrf.mxu0
          %v553 = vadd.f32 0.0, %v552
          %v554 = vpop.f32.mrf.mxu0
          %555 = vmatprep.mubr.bf16.mxu0 0
          %556 = vmatmul.mubr.bf16.gmra.mxu0 %v401
          %v557 = vpop.f32.mrf.mxu0
          %v558 = vadd.f32 0.0, %v557
          %v559 = vpop.f32.mrf.mxu0
          %v560 = vpop.f32.mrf.mxu0
          %v561 = vadd.f32 0.0, %v560
          %v562 = vpop.f32.mrf.mxu0
          %563 = vmatprep.mubr.bf16.mxu0 0
          %564 = vmatmul.mubr.bf16.gmra.mxu0 %v402
          %v565 = vpop.f32.mrf.mxu0
          %v566 = vadd.f32 0.0, %v565
          %v567 = vpop.f32.mrf.mxu0
          %v568 = vpop.f32.mrf.mxu0
          %v569 = vadd.f32 0.0, %v568
          %v570 = vpop.f32.mrf.mxu0
          %571 = vmatprep.mubr.bf16.mxu0 0
          %572 = vmatmul.mubr.bf16.gmra.mxu0 %v403
          %v573 = vpop.f32.mrf.mxu0
          %v574 = vadd.f32 0.0, %v573
          %v575 = vpop.f32.mrf.mxu0
          %v576 = vpop.f32.mrf.mxu0
          %v577 = vadd.f32 0.0, %v576
          %v578 = vpop.f32.mrf.mxu0
          %579 = vmatprep.mubr.bf16.mxu0 0
          %580 = vmatmul.mubr.bf16.gmra.mxu0 %v404
          %v581 = vpop.f32.mrf.mxu0
          %v582 = vadd.f32 0.0, %v581
          %v583 = vpop.f32.mrf.mxu0
          %v584 = vpop.f32.mrf.mxu0
          %v585 = vadd.f32 0.0, %v584
          %v586 = vpop.f32.mrf.mxu0
          %587 = vmatprep.mubr.bf16.mxu0 0
          %588 = vmatmul.mubr.bf16.gmra.mxu0 %v405
          %v589 = vpop.f32.mrf.mxu0
          %v590 = vadd.f32 0.0, %v589
          %v591 = vpop.f32.mrf.mxu0
          %v592 = vpop.f32.mrf.mxu0
          %v593 = vadd.f32 0.0, %v592
          %v594 = vpop.f32.mrf.mxu0
          %595 = vmatprep.mubr.bf16.mxu0 0
          %596 = vmatmul.mubr.bf16.gmra.mxu0 %v406
          %v597 = vpop.f32.mrf.mxu0
          %v598 = vadd.f32 0.0, %v597
          %v599 = vpop.f32.mrf.mxu0
          %v600 = vpop.f32.mrf.mxu0
          %v601 = vadd.f32 0.0, %v600
          %v602 = vpop.f32.mrf.mxu0
          %603 = vmatprep.mubr.bf16.mxu0 0
          %604 = vmatmul.mubr.bf16.gmra.mxu0 %v407
          %v605 = vpop.f32.mrf.mxu0
          %v606 = vadd.f32 0.0, %v605
          %v607 = vpop.f32.mrf.mxu0
          %v608 = vpop.f32.mrf.mxu0
          %v609 = vadd.f32 0.0, %v608
          %v610 = vpop.f32.mrf.mxu0
          %611 = vmatprep.mubr.bf16.mxu0 0
          %612 = vmatmul.mubr.bf16.gmra.mxu0 %v408
          %v613 = vpop.f32.mrf.mxu0
          %v614 = vadd.f32 0.0, %v613
          %v615 = vpop.f32.mrf.mxu0
          %v616 = vpop.f32.mrf.mxu0
          %v617 = vadd.f32 0.0, %v616
          %v618 = vpop.f32.mrf.mxu0
          %619 = vmatprep.mubr.bf16.mxu0 0
          %620 = vmatmul.mubr.bf16.gmra.mxu0 %v409
          %v621 = vpop.f32.mrf.mxu0
          %v622 = vadd.f32 0.0, %v621
          %v623 = vpop.f32.mrf.mxu0
          %v624 = vpop.f32.mrf.mxu0
          %v625 = vadd.f32 0.0, %v624
          %v626 = vpop.f32.mrf.mxu0
          %627 = vmatprep.mubr.bf16.mxu0 0
          %628 = vmatmul.mubr.bf16.gmra.mxu0 %v410
          %v629 = vpop.f32.mrf.mxu0
          %v630 = vadd.f32 0.0, %v629
          %v631 = vpop.f32.mrf.mxu0
          %v632 = vpop.f32.mrf.mxu0
          %v633 = vadd.f32 0.0, %v632
          %v634 = vpop.f32.mrf.mxu0
          %635 = vdwg.mxu0
          %v636 = vpack.c.bf16 %v513, %v510
          %v637 = vpack.c.bf16 %v521, %v518
          %v638 = vpack.c.bf16 %v529, %v526
          %v639 = vpack.c.bf16 %v537, %v534
          %v640 = vpack.c.bf16 %v545, %v542
          %v641 = vpack.c.bf16 %v553, %v550
          %v642 = vpack.c.bf16 %v561, %v558
          %v643 = vpack.c.bf16 %v569, %v566
          %v644 = vpack.c.bf16 %v577, %v574
          %v645 = vpack.c.bf16 %v585, %v582
          %v646 = vpack.c.bf16 %v593, %v590
          %v647 = vpack.c.bf16 %v601, %v598
          %v648 = vpack.c.bf16 %v609, %v606
          %v649 = vpack.c.bf16 %v617, %v614
          %v650 = vpack.c.bf16 %v625, %v622
          %v651 = vpack.c.bf16 %v633, %v630
          %v668 = vunpack.c.l.b16 %v636
          %v669 = vunpack.c.h.b16 %v636
          %v670 = vunpack.c.l.b16 %v637
          %v671 = vunpack.c.h.b16 %v637
          %v672 = vunpack.c.l.b16 %v638
          %v673 = vunpack.c.h.b16 %v638
          %v674 = vunpack.c.l.b16 %v639
          %v675 = vunpack.c.h.b16 %v639
          %v676 = vunpack.c.l.b16 %v640
          %v677 = vunpack.c.h.b16 %v640
          %v678 = vunpack.c.l.b16 %v641
          %v679 = vunpack.c.h.b16 %v641
          %v680 = vunpack.c.l.b16 %v642
          %v681 = vunpack.c.h.b16 %v642
          %v682 = vunpack.c.l.b16 %v643
          %v683 = vunpack.c.h.b16 %v643
          %v684 = vunpack.c.l.b16 %v644
          %v685 = vunpack.c.h.b16 %v644
          %v686 = vunpack.c.l.b16 %v645
          %v687 = vunpack.c.h.b16 %v645
          %v688 = vunpack.c.l.b16 %v646
          %v689 = vunpack.c.h.b16 %v646
          %v690 = vunpack.c.l.b16 %v647
          %v691 = vunpack.c.h.b16 %v647
          %v692 = vunpack.c.l.b16 %v648
          %v693 = vunpack.c.h.b16 %v648
          %v694 = vunpack.c.l.b16 %v649
          %v695 = vunpack.c.h.b16 %v649
          %v696 = vunpack.c.l.b16 %v650
          %v697 = vunpack.c.h.b16 %v650
          %v698 = vunpack.c.l.b16 %v651
          %v699 = vunpack.c.h.b16 %v651
          %v700 = vpack.c.b16 %v668, %v668
          %v701 = vpack.c.b16 %v669, %v669
          %v702 = vpack.c.b16 %v670, %v670
          %v703 = vpack.c.b16 %v671, %v671
          %v704 = vpack.c.b16 %v672, %v672
          %v705 = vpack.c.b16 %v673, %v673
          %v706 = vpack.c.b16 %v674, %v674
          %v707 = vpack.c.b16 %v675, %v675
          %v708 = vpack.c.b16 %v676, %v676
          %v709 = vpack.c.b16 %v677, %v677
          %v710 = vpack.c.b16 %v678, %v678
          %v711 = vpack.c.b16 %v679, %v679
          %v712 = vpack.c.b16 %v680, %v680
          %v713 = vpack.c.b16 %v681, %v681
          %v714 = vpack.c.b16 %v682, %v682
          %v715 = vpack.c.b16 %v683, %v683
          %v716 = vpack.c.b16 %v684, %v684
          %v717 = vpack.c.b16 %v685, %v685
          %v718 = vpack.c.b16 %v686, %v686
          %v719 = vpack.c.b16 %v687, %v687
          %v720 = vpack.c.b16 %v688, %v688
          %v721 = vpack.c.b16 %v689, %v689
          %v722 = vpack.c.b16 %v690, %v690
          %v723 = vpack.c.b16 %v691, %v691
          %v724 = vpack.c.b16 %v692, %v692
          %v725 = vpack.c.b16 %v693, %v693
          %v726 = vpack.c.b16 %v694, %v694
          %v727 = vpack.c.b16 %v695, %v695
          %v728 = vpack.c.b16 %v696, %v696
          %v729 = vpack.c.b16 %v697, %v697
          %v730 = vpack.c.b16 %v698, %v698
          %v731 = vpack.c.b16 %v699, %v699
          %764 = vst [vmem:[#allocation3] sm:$0xf] %v700
          %765 = vst [vmem:[#allocation3 + $0x4] sm:$0xf] %v701
          %766 = vst [vmem:[#allocation3 + $0x8] sm:$0xf] %v702
          %767 = vst [vmem:[#allocation3 + $0xc] sm:$0xf] %v703
          %768 = vst [vmem:[#allocation3 + $0x10] sm:$0xf] %v704
          %769 = vst [vmem:[#allocation3 + $0x14] sm:$0xf] %v705
          %770 = vst [vmem:[#allocation3 + $0x18] sm:$0xf] %v706
          %771 = vst [vmem:[#allocation3 + $0x1c] sm:$0xf] %v707
          %772 = vst [vmem:[#allocation3 + $0x20] sm:$0xf] %v708
          %773 = vst [vmem:[#allocation3 + $0x24] sm:$0xf] %v709
          %774 = vst [vmem:[#allocation3 + $0x28] sm:$0xf] %v710
          %775 = vst [vmem:[#allocation3 + $0x2c] sm:$0xf] %v711
          %776 = vst [vmem:[#allocation3 + $0x30] sm:$0xf] %v712
          %777 = vst [vmem:[#allocation3 + $0x34] sm:$0xf] %v713
          %778 = vst [vmem:[#allocation3 + $0x38] sm:$0xf] %v714
          %779 = vst [vmem:[#allocation3 + $0x3c] sm:$0xf] %v715
          %780 = vst [vmem:[#allocation3 + $0x40] sm:$0xf] %v716
          %781 = vst [vmem:[#allocation3 + $0x44] sm:$0xf] %v717
          %782 = vst [vmem:[#allocation3 + $0x48] sm:$0xf] %v718
          %783 = vst [vmem:[#allocation3 + $0x4c] sm:$0xf] %v719
          %784 = vst [vmem:[#allocation3 + $0x50] sm:$0xf] %v720
          %785 = vst [vmem:[#allocation3 + $0x54] sm:$0xf] %v721
          %786 = vst [vmem:[#allocation3 + $0x58] sm:$0xf] %v722
          %787 = vst [vmem:[#allocation3 + $0x5c] sm:$0xf] %v723
          %788 = vst [vmem:[#allocation3 + $0x60] sm:$0xf] %v724
          %789 = vst [vmem:[#allocation3 + $0x64] sm:$0xf] %v725
          %790 = vst [vmem:[#allocation3 + $0x68] sm:$0xf] %v726
          %791 = vst [vmem:[#allocation3 + $0x6c] sm:$0xf] %v727
          %792 = vst [vmem:[#allocation3 + $0x70] sm:$0xf] %v728
          %793 = vst [vmem:[#allocation3 + $0x74] sm:$0xf] %v729
          %794 = vst [vmem:[#allocation3 + $0x78] sm:$0xf] %v730
          %795 = vst [vmem:[#allocation3 + $0x7c] sm:$0xf] %v731
        $region56: #{tpu_custom_call.1} parent=35 // pred_fallthru
          _
        %s796 = smul.u32 %s23, 128
        %s797 = sshra.s32 %s796, 3
        %s798 = sand.u32 %s796, 7
        %s799 = smul.u32 %s797, 2
        %s800 = smul.addr %s799, 4
        %s801 = scalar_lea.vmem [#allocation7], %s800
        %v802 = vld [vmem:[%s801] sm:$0xff]
        %v803 = vld [vmem:[%s801 + $0x8] sm:$0xff]
        %v804 = vld [vmem:[%s801 + $0x10] sm:$0xff]
        %v805 = vld [vmem:[%s801 + $0x18] sm:$0xff]
        %v806 = vld [vmem:[%s801 + $0x20] sm:$0xff]
        %v807 = vld [vmem:[%s801 + $0x28] sm:$0xff]
        %v808 = vld [vmem:[%s801 + $0x30] sm:$0xff]
        %v809 = vld [vmem:[%s801 + $0x38] sm:$0xff]
        %v810 = vld [vmem:[%s801 + $0x40] sm:$0xff]
        %v811 = vld [vmem:[%s801 + $0x48] sm:$0xff]
        %v812 = vld [vmem:[%s801 + $0x50] sm:$0xff]
        %v813 = vld [vmem:[%s801 + $0x58] sm:$0xff]
        %v814 = vld [vmem:[%s801 + $0x60] sm:$0xff]
        %v815 = vld [vmem:[%s801 + $0x68] sm:$0xff]
        %v816 = vld [vmem:[%s801 + $0x70] sm:$0xff]
        %v817 = vld [vmem:[%s801 + $0x78] sm:$0xff]
        %v818 = vld [vmem:[#allocation3] sm:$0xf]
        %v819 = vld [vmem:[#allocation3 + $0x4] sm:$0xf]
        %v820 = vld [vmem:[#allocation3 + $0x8] sm:$0xf]
        %v821 = vld [vmem:[#allocation3 + $0xc] sm:$0xf]
        %v822 = vld [vmem:[#allocation3 + $0x10] sm:$0xf]
        %v823 = vld [vmem:[#allocation3 + $0x14] sm:$0xf]
        %v824 = vld [vmem:[#allocation3 + $0x18] sm:$0xf]
        %v825 = vld [vmem:[#allocation3 + $0x1c] sm:$0xf]
        %v826 = vld [vmem:[#allocation3 + $0x20] sm:$0xf]
        %v827 = vld [vmem:[#allocation3 + $0x24] sm:$0xf]
        %v828 = vld [vmem:[#allocation3 + $0x28] sm:$0xf]
        %v829 = vld [vmem:[#allocation3 + $0x2c] sm:$0xf]
        %v830 = vld [vmem:[#allocation3 + $0x30] sm:$0xf]
        %v831 = vld [vmem:[#allocation3 + $0x34] sm:$0xf]
        %v832 = vld [vmem:[#allocation3 + $0x38] sm:$0xf]
        %v833 = vld [vmem:[#allocation3 + $0x3c] sm:$0xf]
        %v834 = vld [vmem:[#allocation3 + $0x40] sm:$0xf]
        %v835 = vld [vmem:[#allocation3 + $0x44] sm:$0xf]
        %v836 = vld [vmem:[#allocation3 + $0x48] sm:$0xf]
        %v837 = vld [vmem:[#allocation3 + $0x4c] sm:$0xf]
        %v838 = vld [vmem:[#allocation3 + $0x50] sm:$0xf]
        %v839 = vld [vmem:[#allocation3 + $0x54] sm:$0xf]
        %v840 = vld [vmem:[#allocation3 + $0x58] sm:$0xf]
        %v841 = vld [vmem:[#allocation3 + $0x5c] sm:$0xf]
        %v842 = vld [vmem:[#allocation3 + $0x60] sm:$0xf]
        %v843 = vld [vmem:[#allocation3 + $0x64] sm:$0xf]
        %v844 = vld [vmem:[#allocation3 + $0x68] sm:$0xf]
        %v845 = vld [vmem:[#allocation3 + $0x6c] sm:$0xf]
        %v846 = vld [vmem:[#allocation3 + $0x70] sm:$0xf]
        %v847 = vld [vmem:[#allocation3 + $0x74] sm:$0xf]
        %v848 = vld [vmem:[#allocation3 + $0x78] sm:$0xf]
        %v849 = vld [vmem:[#allocation3 + $0x7c] sm:$0xf]
        %v850 = vld [vmem:[%s256] sm:$0x1]
        %v852 = vlaneseq
        %v853 = vshrl.u32 %v852, 7
        %v854 = vsub.s32 0, %v853
        %v855 = vrot.slane %v850, %v854
        %v873 = vunpack.c.l.b16 %v802
        %v874 = vunpack.c.h.b16 %v802
        %v875 = vunpack.c.l.b16 %v803
        %v876 = vunpack.c.h.b16 %v803
        %v877 = vunpack.c.l.b16 %v804
        %v878 = vunpack.c.h.b16 %v804
        %v879 = vunpack.c.l.b16 %v805
        %v880 = vunpack.c.h.b16 %v805
        %v881 = vunpack.c.l.b16 %v806
        %v882 = vunpack.c.h.b16 %v806
        %v883 = vunpack.c.l.b16 %v807
        %v884 = vunpack.c.h.b16 %v807
        %v885 = vunpack.c.l.b16 %v808
        %v886 = vunpack.c.h.b16 %v808
        %v887 = vunpack.c.l.b16 %v809
        %v888 = vunpack.c.h.b16 %v809
        %v889 = vunpack.c.l.b16 %v810
        %v890 = vunpack.c.h.b16 %v810
        %v891 = vunpack.c.l.b16 %v811
        %v892 = vunpack.c.h.b16 %v811
        %v893 = vunpack.c.l.b16 %v812
        %v894 = vunpack.c.h.b16 %v812
        %v895 = vunpack.c.l.b16 %v813
        %v896 = vunpack.c.h.b16 %v813
        %v897 = vunpack.c.l.b16 %v814
        %v898 = vunpack.c.h.b16 %v814
        %v899 = vunpack.c.l.b16 %v815
        %v900 = vunpack.c.h.b16 %v815
        %v901 = vunpack.c.l.b16 %v816
        %v902 = vunpack.c.h.b16 %v816
        %v903 = vunpack.c.l.b16 %v817
        %v904 = vunpack.c.h.b16 %v817
        %v905 = vpack.c.b16 %v875, %v873
        %v906 = vpack.c.b16 %v876, %v874
        %v907 = vpack.c.b16 %v879, %v877
        %v908 = vpack.c.b16 %v880, %v878
        %v909 = vpack.c.b16 %v883, %v881
        %v910 = vpack.c.b16 %v884, %v882
        %v911 = vpack.c.b16 %v887, %v885
        %v912 = vpack.c.b16 %v888, %v886
        %v913 = vpack.c.b16 %v891, %v889
        %v914 = vpack.c.b16 %v892, %v890
        %v915 = vpack.c.b16 %v895, %v893
        %v916 = vpack.c.b16 %v896, %v894
        %v917 = vpack.c.b16 %v899, %v897
        %v918 = vpack.c.b16 %v900, %v898
        %v919 = vpack.c.b16 %v903, %v901
        %v920 = vpack.c.b16 %v904, %v902
        %v969 = vunpack.c.l.b16 %v818
        %v970 = vunpack.c.l.b16 %v819
        %v971 = vunpack.c.l.b16 %v820
        %v972 = vunpack.c.l.b16 %v821
        %v973 = vunpack.c.l.b16 %v822
        %v974 = vunpack.c.l.b16 %v823
        %v975 = vunpack.c.l.b16 %v824
        %v976 = vunpack.c.l.b16 %v825
        %v977 = vunpack.c.l.b16 %v826
        %v978 = vunpack.c.l.b16 %v827
        %v979 = vunpack.c.l.b16 %v828
        %v980 = vunpack.c.l.b16 %v829
        %v981 = vunpack.c.l.b16 %v830
        %v982 = vunpack.c.l.b16 %v831
        %v983 = vunpack.c.l.b16 %v832
        %v984 = vunpack.c.l.b16 %v833
        %v985 = vunpack.c.l.b16 %v834
        %v986 = vunpack.c.l.b16 %v835
        %v987 = vunpack.c.l.b16 %v836
        %v988 = vunpack.c.l.b16 %v837
        %v989 = vunpack.c.l.b16 %v838
        %v990 = vunpack.c.l.b16 %v839
        %v991 = vunpack.c.l.b16 %v840
        %v992 = vunpack.c.l.b16 %v841
        %v993 = vunpack.c.l.b16 %v842
        %v994 = vunpack.c.l.b16 %v843
        %v995 = vunpack.c.l.b16 %v844
        %v996 = vunpack.c.l.b16 %v845
        %v997 = vunpack.c.l.b16 %v846
        %v998 = vunpack.c.l.b16 %v847
        %v999 = vunpack.c.l.b16 %v848
        %v1000 = vunpack.c.l.b16 %v849
        %v1001 = vpack.c.b16 %v970, %v969
        %v1002 = vpack.c.b16 %v972, %v971
        %v1003 = vpack.c.b16 %v974, %v973
        %v1004 = vpack.c.b16 %v976, %v975
        %v1005 = vpack.c.b16 %v978, %v977
        %v1006 = vpack.c.b16 %v980, %v979
        %v1007 = vpack.c.b16 %v982, %v981
        %v1008 = vpack.c.b16 %v984, %v983
        %v1009 = vpack.c.b16 %v986, %v985
        %v1010 = vpack.c.b16 %v988, %v987
        %v1011 = vpack.c.b16 %v990, %v989
        %v1012 = vpack.c.b16 %v992, %v991
        %v1013 = vpack.c.b16 %v994, %v993
        %v1014 = vpack.c.b16 %v996, %v995
        %v1015 = vpack.c.b16 %v998, %v997
        %v1016 = vpack.c.b16 %v1000, %v999
        %1033 = vmatprep.subr.bf16.mxu0 0
        %1034 = vmatpush1.bf16.msra.mxu0 %v1008
        %1035 = vmatprep.subr.bf16.mxu0 0
        %1036 = vmatpush1.bf16.msra.mxu0 %v1007
        %1037 = vmatprep.subr.bf16.mxu0 0
        %1038 = vmatpush1.bf16.msra.mxu0 %v1006
        %1039 = vmatprep.subr.bf16.mxu0 0
        %1040 = vmatpush1.bf16.msra.mxu0 %v1005
        %1041 = vmatprep.subr.bf16.mxu0 0
        %1042 = vmatpush1.bf16.msra.mxu0 %v1004
        %1043 = vmatprep.subr.bf16.mxu0 0
        %1044 = vmatpush1.bf16.msra.mxu0 %v1003
        %1045 = vmatprep.subr.bf16.mxu0 0
        %1046 = vmatpush1.bf16.msra.mxu0 %v1002
        %1047 = vmatprep.subr.bf16.mxu0 0
        %1048 = vmatpush1.bf16.msra.mxu0 %v1001
        %1049 = vmatprep.subr.bf16.mxu0 0
        %1050 = vmatpush2.bf16.msra.mxu0 %v1016
        %1051 = vmatprep.subr.bf16.mxu0 0
        %1052 = vmatpush2.bf16.msra.mxu0 %v1015
        %1053 = vmatprep.subr.bf16.mxu0 0
        %1054 = vmatpush2.bf16.msra.mxu0 %v1014
        %1055 = vmatprep.subr.bf16.mxu0 0
        %1056 = vmatpush2.bf16.msra.mxu0 %v1013
        %1057 = vmatprep.subr.bf16.mxu0 0
        %1058 = vmatpush2.bf16.msra.mxu0 %v1012
        %1059 = vmatprep.subr.bf16.mxu0 0
        %1060 = vmatpush2.bf16.msra.mxu0 %v1011
        %1061 = vmatprep.subr.bf16.mxu0 0
        %1062 = vmatpush2.bf16.msra.mxu0 %v1010
        %1063 = vmatprep.subr.bf16.mxu0 0
        %1064 = vmatpush2.bf16.msra.mxu0 %v1009
        %1065 = vmatprep.mubr.bf16.mxu0 %v906
        %1066 = vmatmul.mubr.bf16.gmra.mxu0 %v905
        %v1067 = vpop.f32.mrf.mxu0
        %v1068 = vadd.f32 %v855, %v1067
        %v1069 = vpop.f32.mrf.mxu0
        %v1070 = vpop.f32.mrf.mxu0
        %v1071 = vadd.f32 %v855, %v1070
        %v1072 = vpop.f32.mrf.mxu0
        %1073 = vmatprep.mubr.bf16.mxu0 %v908
        %1074 = vmatmul.mubr.bf16.gmra.mxu0 %v907
        %v1075 = vpop.f32.mrf.mxu0
        %v1076 = vadd.f32 %v855, %v1075
        %v1077 = vpop.f32.mrf.mxu0
        %v1078 = vpop.f32.mrf.mxu0
        %v1079 = vadd.f32 %v855, %v1078
        %v1080 = vpop.f32.mrf.mxu0
        %1081 = vmatprep.mubr.bf16.mxu0 %v910
        %1082 = vmatmul.mubr.bf16.gmra.mxu0 %v909
        %v1083 = vpop.f32.mrf.mxu0
        %v1084 = vadd.f32 %v855, %v1083
        %v1085 = vpop.f32.mrf.mxu0
        %v1086 = vpop.f32.mrf.mxu0
        %v1087 = vadd.f32 %v855, %v1086
        %v1088 = vpop.f32.mrf.mxu0
        %1089 = vmatprep.mubr.bf16.mxu0 %v912
        %1090 = vmatmul.mubr.bf16.gmra.mxu0 %v911
        %v1091 = vpop.f32.mrf.mxu0
        %v1092 = vadd.f32 %v855, %v1091
        %v1093 = vpop.f32.mrf.mxu0
        %v1094 = vpop.f32.mrf.mxu0
        %v1095 = vadd.f32 %v855, %v1094
        %v1096 = vpop.f32.mrf.mxu0
        %1097 = vmatprep.mubr.bf16.mxu0 %v914
        %1098 = vmatmul.mubr.bf16.gmra.mxu0 %v913
        %v1099 = vpop.f32.mrf.mxu0
        %v1100 = vadd.f32 %v855, %v1099
        %v1101 = vpop.f32.mrf.mxu0
        %v1102 = vpop.f32.mrf.mxu0
        %v1103 = vadd.f32 %v855, %v1102
        %v1104 = vpop.f32.mrf.mxu0
        %1105 = vmatprep.mubr.bf16.mxu0 %v916
        %1106 = vmatmul.mubr.bf16.gmra.mxu0 %v915
        %v1107 = vpop.f32.mrf.mxu0
        %v1108 = vadd.f32 %v855, %v1107
        %v1109 = vpop.f32.mrf.mxu0
        %v1110 = vpop.f32.mrf.mxu0
        %v1111 = vadd.f32 %v855, %v1110
        %v1112 = vpop.f32.mrf.mxu0
        %1113 = vmatprep.mubr.bf16.mxu0 %v918
        %1114 = vmatmul.mubr.bf16.gmra.mxu0 %v917
        %v1115 = vpop.f32.mrf.mxu0
        %v1116 = vadd.f32 %v855, %v1115
        %v1117 = vpop.f32.mrf.mxu0
        %v1118 = vpop.f32.mrf.mxu0
        %v1119 = vadd.f32 %v855, %v1118
        %v1120 = vpop.f32.mrf.mxu0
        %1121 = vmatprep.mubr.bf16.mxu0 %v920
        %1122 = vmatmul.mubr.bf16.gmra.mxu0 %v919
        %v1123 = vpop.f32.mrf.mxu0
        %v1124 = vadd.f32 %v855, %v1123
        %v1125 = vpop.f32.mrf.mxu0
        %v1126 = vpop.f32.mrf.mxu0
        %v1127 = vadd.f32 %v855, %v1126
        %v1128 = vpop.f32.mrf.mxu0
        %1129 = vdwg.mxu0
        %v1130 = vmax.f32 %v1068, 0.0
        %v1131 = vmax.f32 %v1071, 0.0
        %v1132 = vmax.f32 %v1076, 0.0
        %v1133 = vmax.f32 %v1079, 0.0
        %v1134 = vmax.f32 %v1084, 0.0
        %v1135 = vmax.f32 %v1087, 0.0
        %v1136 = vmax.f32 %v1092, 0.0
        %v1137 = vmax.f32 %v1095, 0.0
        %v1138 = vmax.f32 %v1100, 0.0
        %v1139 = vmax.f32 %v1103, 0.0
        %v1140 = vmax.f32 %v1108, 0.0
        %v1141 = vmax.f32 %v1111, 0.0
        %v1142 = vmax.f32 %v1116, 0.0
        %v1143 = vmax.f32 %v1119, 0.0
        %v1144 = vmax.f32 %v1124, 0.0
        %v1145 = vmax.f32 %v1127, 0.0
        %s1146 = scalar_lea.vmem [#allocation2], %s796
        %v1147 = vld [vmem:[%s1146] sm:$0xff]
        %v1148 = vld [vmem:[%s1146 + $0x8] sm:$0xff]
        %v1149 = vld [vmem:[%s1146 + $0x10] sm:$0xff]
        %v1150 = vld [vmem:[%s1146 + $0x18] sm:$0xff]
        %v1151 = vld [vmem:[%s1146 + $0x20] sm:$0xff]
        %v1152 = vld [vmem:[%s1146 + $0x28] sm:$0xff]
        %v1153 = vld [vmem:[%s1146 + $0x30] sm:$0xff]
        %v1154 = vld [vmem:[%s1146 + $0x38] sm:$0xff]
        %v1155 = vld [vmem:[%s1146 + $0x40] sm:$0xff]
        %v1156 = vld [vmem:[%s1146 + $0x48] sm:$0xff]
        %v1157 = vld [vmem:[%s1146 + $0x50] sm:$0xff]
        %v1158 = vld [vmem:[%s1146 + $0x58] sm:$0xff]
        %v1159 = vld [vmem:[%s1146 + $0x60] sm:$0xff]
        %v1160 = vld [vmem:[%s1146 + $0x68] sm:$0xff]
        %v1161 = vld [vmem:[%s1146 + $0x70] sm:$0xff]
        %v1162 = vld [vmem:[%s1146 + $0x78] sm:$0xff]
        %v1163 = vadd.f32 %v1147, %v1130
        %v1164 = vadd.f32 %v1148, %v1131
        %v1165 = vadd.f32 %v1149, %v1132
        %v1166 = vadd.f32 %v1150, %v1133
        %v1167 = vadd.f32 %v1151, %v1134
        %v1168 = vadd.f32 %v1152, %v1135
        %v1169 = vadd.f32 %v1153, %v1136
        %v1170 = vadd.f32 %v1154, %v1137
        %v1171 = vadd.f32 %v1155, %v1138
        %v1172 = vadd.f32 %v1156, %v1139
        %v1173 = vadd.f32 %v1157, %v1140
        %v1174 = vadd.f32 %v1158, %v1141
        %v1175 = vadd.f32 %v1159, %v1142
        %v1176 = vadd.f32 %v1160, %v1143
        %v1177 = vadd.f32 %v1161, %v1144
        %v1178 = vadd.f32 %v1162, %v1145
        %1179 = vst [vmem:[%s1146] sm:$0xff] %v1163
        %1180 = vst [vmem:[%s1146 + $0x8] sm:$0xff] %v1164
        %1181 = vst [vmem:[%s1146 + $0x10] sm:$0xff] %v1165
        %1182 = vst [vmem:[%s1146 + $0x18] sm:$0xff] %v1166
        %1183 = vst [vmem:[%s1146 + $0x20] sm:$0xff] %v1167
        %1184 = vst [vmem:[%s1146 + $0x28] sm:$0xff] %v1168
        %1185 = vst [vmem:[%s1146 + $0x30] sm:$0xff] %v1169
        %1186 = vst [vmem:[%s1146 + $0x38] sm:$0xff] %v1170
        %1187 = vst [vmem:[%s1146 + $0x40] sm:$0xff] %v1171
        %1188 = vst [vmem:[%s1146 + $0x48] sm:$0xff] %v1172
        %1189 = vst [vmem:[%s1146 + $0x50] sm:$0xff] %v1173
        %1190 = vst [vmem:[%s1146 + $0x58] sm:$0xff] %v1174
        %1191 = vst [vmem:[%s1146 + $0x60] sm:$0xff] %v1175
        %1192 = vst [vmem:[%s1146 + $0x68] sm:$0xff] %v1176
        %1193 = vst [vmem:[%s1146 + $0x70] sm:$0xff] %v1177
        %1194 = vst [vmem:[%s1146 + $0x78] sm:$0xff] %v1178
        %p1195 = scmp.eq.s32.totalorder %s22, 2
        // Predicated region
        $region57: #{tpu_custom_call.1} parent=35 // pred_check
          %p1196 = pneg %p1195
        $region58: #{tpu_custom_call.1} parent=35 // pred_check_branch
          %1198 = sbr.rel (%p1196) target = $region60
        $region59: #{tpu_custom_call.1} parent=35 // pred_region
          %v1199 = vmul.f32 %v1163, %v1163
          %v1200 = vmul.f32 %v1164, %v1164
          %v1201 = vmul.f32 %v1165, %v1165
          %v1202 = vmul.f32 %v1166, %v1166
          %v1203 = vmul.f32 %v1167, %v1167
          %v1204 = vmul.f32 %v1168, %v1168
          %v1205 = vmul.f32 %v1169, %v1169
          %v1206 = vmul.f32 %v1170, %v1170
          %v1207 = vmul.f32 %v1171, %v1171
          %v1208 = vmul.f32 %v1172, %v1172
          %v1209 = vmul.f32 %v1173, %v1173
          %v1210 = vmul.f32 %v1174, %v1174
          %v1211 = vmul.f32 %v1175, %v1175
          %v1212 = vmul.f32 %v1176, %v1176
          %v1213 = vmul.f32 %v1177, %v1177
          %v1214 = vmul.f32 %v1178, %v1178
          %1215 = vadd.xlane.f32.xlu0 %v1199
          %v1216 = vpop.xlane.xlu0 %1215
          %1217 = vadd.xlane.f32.xlu0 %v1200
          %v1218 = vpop.xlane.xlu0 %1217
          %1219 = vadd.xlane.f32.xlu0 %v1201
          %v1220 = vpop.xlane.xlu0 %1219
          %1221 = vadd.xlane.f32.xlu0 %v1202
          %v1222 = vpop.xlane.xlu0 %1221
          %1223 = vadd.xlane.f32.xlu0 %v1203
          %v1224 = vpop.xlane.xlu0 %1223
          %1225 = vadd.xlane.f32.xlu0 %v1204
          %v1226 = vpop.xlane.xlu0 %1225
          %1227 = vadd.xlane.f32.xlu0 %v1205
          %v1228 = vpop.xlane.xlu0 %1227
          %1229 = vadd.xlane.f32.xlu0 %v1206
          %v1230 = vpop.xlane.xlu0 %1229
          %1231 = vadd.xlane.f32.xlu0 %v1207
          %v1232 = vpop.xlane.xlu0 %1231
          %1233 = vadd.xlane.f32.xlu0 %v1208
          %v1234 = vpop.xlane.xlu0 %1233
          %1235 = vadd.xlane.f32.xlu0 %v1209
          %v1236 = vpop.xlane.xlu0 %1235
          %1237 = vadd.xlane.f32.xlu0 %v1210
          %v1238 = vpop.xlane.xlu0 %1237
          %1239 = vadd.xlane.f32.xlu0 %v1211
          %v1240 = vpop.xlane.xlu0 %1239
          %1241 = vadd.xlane.f32.xlu0 %v1212
          %v1242 = vpop.xlane.xlu0 %1241
          %1243 = vadd.xlane.f32.xlu0 %v1213
          %v1244 = vpop.xlane.xlu0 %1243
          %1245 = vadd.xlane.f32.xlu0 %v1214
          %v1246 = vpop.xlane.xlu0 %1245
          %v1247 = vmax.f32 %v1216, 1e-24
          %v1248 = vmax.f32 %v1218, 1e-24
          %v1249 = vmax.f32 %v1220, 1e-24
          %v1250 = vmax.f32 %v1222, 1e-24
          %v1251 = vmax.f32 %v1224, 1e-24
          %v1252 = vmax.f32 %v1226, 1e-24
          %v1253 = vmax.f32 %v1228, 1e-24
          %v1254 = vmax.f32 %v1230, 1e-24
          %v1255 = vmax.f32 %v1232, 1e-24
          %v1256 = vmax.f32 %v1234, 1e-24
          %v1257 = vmax.f32 %v1236, 1e-24
          %v1258 = vmax.f32 %v1238, 1e-24
          %v1259 = vmax.f32 %v1240, 1e-24
          %v1260 = vmax.f32 %v1242, 1e-24
          %v1261 = vmax.f32 %v1244, 1e-24
          %v1262 = vmax.f32 %v1246, 1e-24
          %v1263 = vrsqrt.pop %v1247
          %v1264 = vrsqrt.pop %v1248
          %v1265 = vrsqrt.pop %v1249
          %v1266 = vrsqrt.pop %v1250
          %v1267 = vrsqrt.pop %v1251
          %v1268 = vrsqrt.pop %v1252
          %v1269 = vrsqrt.pop %v1253
          %v1270 = vrsqrt.pop %v1254
          %v1271 = vrsqrt.pop %v1255
          %v1272 = vrsqrt.pop %v1256
          %v1273 = vrsqrt.pop %v1257
          %v1274 = vrsqrt.pop %v1258
          %v1275 = vrsqrt.pop %v1259
          %v1276 = vrsqrt.pop %v1260
          %v1277 = vrsqrt.pop %v1261
          %v1278 = vrsqrt.pop %v1262
          %v1279 = vmul.f32 %v1163, %v1263
          %v1280 = vmul.f32 %v1164, %v1264
          %v1281 = vmul.f32 %v1165, %v1265
          %v1282 = vmul.f32 %v1166, %v1266
          %v1283 = vmul.f32 %v1167, %v1267
          %v1284 = vmul.f32 %v1168, %v1268
          %v1285 = vmul.f32 %v1169, %v1269
          %v1286 = vmul.f32 %v1170, %v1270
          %v1287 = vmul.f32 %v1171, %v1271
          %v1288 = vmul.f32 %v1172, %v1272
          %v1289 = vmul.f32 %v1173, %v1273
          %v1290 = vmul.f32 %v1174, %v1274
          %v1291 = vmul.f32 %v1175, %v1275
          %v1292 = vmul.f32 %v1176, %v1276
          %v1293 = vmul.f32 %v1177, %v1277
          %v1294 = vmul.f32 %v1178, %v1278
          %s1295 = scalar_lea.vmem [#allocation10], %s796
          %1296 = vst [vmem:[%s1295] sm:$0xff] %v1279
          %1297 = vst [vmem:[%s1295 + $0x8] sm:$0xff] %v1280
          %1298 = vst [vmem:[%s1295 + $0x10] sm:$0xff] %v1281
          %1299 = vst [vmem:[%s1295 + $0x18] sm:$0xff] %v1282
          %1300 = vst [vmem:[%s1295 + $0x20] sm:$0xff] %v1283
          %1301 = vst [vmem:[%s1295 + $0x28] sm:$0xff] %v1284
          %1302 = vst [vmem:[%s1295 + $0x30] sm:$0xff] %v1285
          %1303 = vst [vmem:[%s1295 + $0x38] sm:$0xff] %v1286
          %1304 = vst [vmem:[%s1295 + $0x40] sm:$0xff] %v1287
          %1305 = vst [vmem:[%s1295 + $0x48] sm:$0xff] %v1288
          %1306 = vst [vmem:[%s1295 + $0x50] sm:$0xff] %v1289
          %1307 = vst [vmem:[%s1295 + $0x58] sm:$0xff] %v1290
          %1308 = vst [vmem:[%s1295 + $0x60] sm:$0xff] %v1291
          %1309 = vst [vmem:[%s1295 + $0x68] sm:$0xff] %v1292
          %1310 = vst [vmem:[%s1295 + $0x70] sm:$0xff] %v1293
          %1311 = vst [vmem:[%s1295 + $0x78] sm:$0xff] %v1294
        $region60: #{tpu_custom_call.1} parent=35 // pred_fallthru
          _
        // Predicated region
        $region61: #{tpu_custom_call.1} parent=35 // pred_check
          %p1312 = pneg %p137
        $region62: #{tpu_custom_call.1} parent=35 // pred_check_branch
          %1314 = sbr.rel (%p1312) target = $region64
        $region63: #{tpu_custom_call.1} parent=35 // pred_region
          %s1316 = ssub.s32 4096, 4096
          %1317 = vsyncadd [#allocation6], %s1316
          %s1318 = sshll.u32 [#allocation10], 4
          %s1319 = int_to_ptr.vmem [resolvable:$true] %s1318
          %1324 = dma.vmem_to_hbm [thread:$0]  %s1319, 4096, %s4, [#allocation6], 128, 128, 8
        $region64: #{tpu_custom_call.1} parent=35 // pred_fallthru
          _
        // Predicated region
        $region65: #{tpu_custom_call.1} parent=35 // pred_check
          %p1325 = pneg %p137
        $region66: #{tpu_custom_call.1} parent=35 // pred_check_branch
          %1327 = sbr.rel (%p1325) target = $region68
        $region67: #{tpu_custom_call.1} parent=35 // pred_region
          %1328 = dma.done [#allocation6], 4096
        $region68: #{tpu_custom_call.1} parent=35 // pred_fallthru
          _
      $region36: #{tpu_custom_call.1} parent=5 // pred_fallthru
        _
      %p1329 = scmp.le.s32.totalorder 2, %s13
      // Predicated region
      $region69: #{tpu_custom_call.1} parent=5 // pred_check
        %p1330 = pneg %p1329
      $region70: #{tpu_custom_call.1} parent=5 // pred_check_branch
        %1332 = sbr.rel (%p1330) target = $region72
      $region71: #{tpu_custom_call.1} parent=5 // pred_region
        %s1333 = ssub.s32 %s13, 2
      $region72: #{tpu_custom_call.1} parent=5 // pred_fallthru
        _
    $region6: #{tpu_custom_call.1} parent=1 // loop_footer
      %s17 = sadd.s32 1, %s13
    $region7: #{tpu_custom_call.1} parent=1 // loop_footer_branch
      %12 = sbr.rel target = $region3
    $region8: #{tpu_custom_call.1} parent=1 // loop_exit
      _
    %1334 = vsyncpa [#allocation5], 1
    %s1335 = scalar_lea.sflag [#allocation5], 1
    %1336 = vsyncpa %s1335, 1
    %1337 = vsyncpa [#allocation8], 1
    %1338 = vsyncpa [#allocation6], 1
    %s1339 = scalar_lea.sflag [#allocation6], 1
    %1340 = vsyncpa %s1339, 1

</llo_original>
